<compile_context>
chip_gen: v7x
topology: tpu7x:2x2x1
jax: 0.10.0
libtpu: 0.0.40
codegen_flags: <defaults>
</compile_context>

<pallas_src>
from types import SimpleNamespace

import jax
import jax.numpy as jnp
from jax.experimental import pallas as pl
from jax.experimental.pallas import tpu as pltpu

_EPS = 1e-7
_LANE = 128
_SUBLANE = 8
_TYPES = ("coarse", "fine")

# rays per grid step (mask stream = 1 elem/ray, rgb stream = 3 elems/ray)
_DENSE_BLOCK_RAYS = 32768    # dense (rows,128) windows: ~3 MiB double-buffered f32
_SPARSE_BLOCK_RAYS = 8192    # ragged (1,X) windows pad to 8 sublanes: ~12 MiB worst


# ----------------------------------------------------------------------------
# fused masked-BCE + MSE reduction kernel
# ----------------------------------------------------------------------------
def _make_fused_kernel(n_mm_preds, n_rgb_preds, mm_block, rgb_block):
    """Kernel computing
         acc[0] = sum_preds sum_i  BCE(clip(pred_i), gt_i) * (gt_i >= 0)
         acc[1] = sum_preds sum_i  (pred_i - tgt_i)^2
       Blocks at the array edge may be partially out-of-bounds; the garbage is
       zeroed by the flat-index mask derived from the scalar-prefetched counts.
    """
    n_in = (n_mm_preds + 1 if n_mm_preds else 0) + (n_rgb_preds + 1 if n_rgb_preds else 0)

    def _flat_index(block, pid):
        rows, cols = block
        lidx = jax.lax.broadcasted_iota(jnp.int32, (rows, cols), 1)
        if rows > 1:
            ridx = jax.lax.broadcasted_iota(jnp.int32, (rows, cols), 0)
            flat = ridx * cols + lidx
        else:
            flat = lidx
        return pid * (rows * cols) + flat

    def kernel(nelem_ref, *refs):
        in_refs = refs[:n_in]
        bce_out_ref = refs[n_in]
        mse_out_ref = refs[n_in + 1]
        acc_ref = refs[n_in + 2]          # SMEM (2,) f32 scratch accumulator
        pid = pl.program_id(0)

        @pl.when(pid == 0)
        def _init():
            acc_ref[0] = jnp.float32(0.0)
            acc_ref[1] = jnp.float32(0.0)

        off = 0
        if n_mm_preds:
            mm_pred_refs = in_refs[:n_mm_preds]
            gt_ref = in_refs[n_mm_preds]
            off = n_mm_preds + 1
            gt = gt_ref[...].astype(jnp.float32)
            # NOTE: valid mirror-mask GT must be strictly {0,1}; -1 marks invalid.
            # Single-log BCE:  -(y log p + (1-y) log(1-p)) == -log(p if y else 1-p).
            take_p = gt > 0.5
            term = None
            for p_ref in mm_pred_refs:
                p = jnp.clip(p_ref[...].astype(jnp.float32), _EPS, 1.0 - _EPS)
                t = -jnp.log(jnp.where(take_p, p, 1.0 - p))
                term = t if term is None else term + t
            in_range = _flat_index(mm_block, pid) < nelem_ref[0]
            valid = jnp.logical_and(in_range, gt >= 0.0)
            acc_ref[0] += jnp.sum(jnp.where(valid, term, 0.0))

        if n_rgb_preds:
            rgb_pred_refs = in_refs[off:off + n_rgb_preds]
            tgt_ref = in_refs[off + n_rgb_preds]
            tgt = tgt_ref[...].astype(jnp.float32)
            sq = None
            for p_ref in rgb_pred_refs:
                d = p_ref[...].astype(jnp.float32) - tgt
                sq = d * d if sq is None else sq + d * d
            in_range = _flat_index(rgb_block, pid) < nelem_ref[1]
            acc_ref[1] += jnp.sum(jnp.where(in_range, sq, 0.0))

        @pl.when(pid == pl.num_programs(0) - 1)
        def _finalize():
            bce_out_ref[...] = jnp.full((_SUBLANE, _LANE), acc_ref[0], jnp.float32)
            mse_out_ref[...] = jnp.full((_SUBLANE, _LANE), acc_ref[1], jnp.float32)

    return kernel


def _fused_loss_sums(mm_preds, mm_gt, rgb_preds, rgb_tgt, block_rays=None):
    """One pallas_call returning (masked-BCE sum over mm_preds, MSE sum over rgb_preds).

    Inputs stay in their original dtype (bf16 predictions are fine); only free
    reshapes are applied -- no pad / astype copies are materialized.
    """
    mm_preds = [jnp.reshape(p, (-1,)) for p in (mm_preds or [])]
    rgb_preds = [jnp.reshape(p, (-1,)) for p in (rgb_preds or [])]
    mm_gt1 = jnp.reshape(mm_gt, (-1,)) if mm_preds else None
    rgb_t1 = jnp.reshape(rgb_tgt, (-1,)) if rgb_preds else None
    n_mm = int(mm_gt1.shape[0]) if mm_preds else 0
    n_rgb = int(rgb_t1.shape[0]) if rgb_preds else 0
    if not (n_mm or n_rgb):
        return jnp.float32(0.0), jnp.float32(0.0)
    if n_mm and n_rgb and n_rgb != 3 * n_mm:
        raise ValueError("fused launch expects 3 rgb elements per mask element")

    n_unit = n_mm if n_mm else n_rgb          # elements of the "unit" stream
    rgb_factor = 3 if n_mm else 1             # rgb elements per unit element
    dense = (n_unit % _LANE) == 0             # free reshape to (rows, 128)?

    cap = block_rays if block_rays is not None else (
        _DENSE_BLOCK_RAYS if dense else _SPARSE_BLOCK_RAYS)
    if not n_mm:
        cap = cap * 3                         # cap is expressed in rays
    b_unit = min(cap, n_unit)
    if b_unit < n_unit:
        # sub-full blocks must be layout-legal: lanes %128, dense rows %8
        quantum = _SUBLANE * _LANE if dense else _LANE
        b_unit = max(quantum, (b_unit // quantum) * quantum)
    grid_n = int(pl.cdiv(n_unit, b_unit))
    b_mm = b_unit if n_mm else 0
    b_rgb = rgb_factor * b_unit if n_rgb else 0

    def _present(x):
        return jnp.reshape(x, (-1, _LANE)) if dense else jnp.reshape(x, (1, -1))

    def _block(elems):
        return (elems // _LANE, _LANE) if dense else (1, elems)

    idx_map = (lambda i, ns: (i, 0)) if dense else (lambda i, ns: (0, i))

    ops, in_specs = [], []
    mm_block = rgb_block = None
    if n_mm:
        mm_block = _block(b_mm)
        for p in mm_preds:
            ops.append(_present(p))
            in_specs.append(pl.BlockSpec(mm_block, idx_map))
        ops.append(_present(mm_gt1))
        in_specs.append(pl.BlockSpec(mm_block, idx_map))
    if n_rgb:
        rgb_block = _block(b_rgb)
        for p in rgb_preds:
            ops.append(_present(p))
            in_specs.append(pl.BlockSpec(rgb_block, idx_map))
        ops.append(_present(rgb_t1))
        in_specs.append(pl.BlockSpec(rgb_block, idx_map))

    kernel = _make_fused_kernel(len(mm_preds) if n_mm else 0,
                                len(rgb_preds) if n_rgb else 0,
                                mm_block, rgb_block)
    nelems = jnp.array([n_mm, n_rgb], dtype=jnp.int32)
    out_tile = jax.ShapeDtypeStruct((_SUBLANE, _LANE), jnp.float32)

    bce_tile, mse_tile = pl.pallas_call(
        kernel,
        out_shape=(out_tile, out_tile),
        grid_spec=pltpu.PrefetchScalarGridSpec(
            num_scalar_prefetch=1,
            grid=(grid_n,),
            in_specs=in_specs,
            out_specs=(pl.BlockSpec((_SUBLANE, _LANE), lambda i, ns: (0, 0)),
                       pl.BlockSpec((_SUBLANE, _LANE), lambda i, ns: (0, 0))),
            scratch_shapes=[pltpu.SMEM((2,), jnp.float32)]),
        compiler_params=pltpu.CompilerParams(
            # TODO(synk): on v7x use pltpu.CORE_PARALLEL with a per-core split.
            dimension_semantics=("arbitrary",),
            vmem_limit_bytes=32 * 1024 * 1024),
    )(nelems, *ops)
    return bce_tile[0, 0], mse_tile[0, 0]


# ----------------------------------------------------------------------------
# loss modules (forward-pass equivalents of the PyTorch classes)
# ----------------------------------------------------------------------------
class ColorLoss:
    def __init__(self, coef=1.0, woMaskRGBtoBlack=False):
        self.coef = coef
        self.woMaskRGBtoBlack = woMaskRGBtoBlack

    @staticmethod
    def _masked_mse(pred, targets, keep):
        keep = keep.astype(jnp.float32)
        d = (jnp.reshape(pred, (-1, 3)) - targets) * keep[:, None]
        return jnp.sum(d * d) / (jnp.sum(keep) * 3.0)

    def __call__(self, inputs, batch, train_geometry_stage=False,
                 mirror_mask_has_invalid=None):
        targets = jnp.reshape(batch["rgbs"], (-1, 3))
        loss = jnp.float32(0.0)
        if (train_geometry_stage and "mirror_mask" in batch
                and mirror_mask_has_invalid is None):
            # TODO(synk): host sync; pass mirror_mask_has_invalid to stay jittable.
            mirror_mask_has_invalid = bool(jnp.any(batch["mirror_mask"] < 0))

        if train_geometry_stage and "mirror_mask" in batch and mirror_mask_has_invalid:
            # geometry stage: masked-by-predicted-mirror MSE (thin gather, plain JAX)
            if "mirror_mask_fine" in inputs or "mirror_mask_coarse" in inputs:
                mm = inputs.get("mirror_mask_fine", inputs.get("mirror_mask_coarse"))
                mm = jax.lax.stop_gradient(jnp.reshape(mm, (-1,)))
                keep = mm < 0.5
                for typ in _TYPES:
                    if f"rgb_{typ}" in inputs:
                        loss = loss + self._masked_mse(inputs[f"rgb_{typ}"], targets, keep)
        elif train_geometry_stage and "mirror_mask" in batch and self.woMaskRGBtoBlack:
            keep = jnp.reshape(batch["mirror_mask"], (-1,)) == 0
            for typ in _TYPES:
                if f"rgb_{typ}" in inputs:
                    loss = loss + self._masked_mse(inputs[f"rgb_{typ}"], targets, keep)
        else:
            preds = [inputs[f"rgb_{typ}"] for typ in _TYPES if f"rgb_{typ}" in inputs]
            if preds:
                _, mse_sum = _fused_loss_sums([], None, preds, targets)
                loss = mse_sum / jnp.float32(targets.size)
        return self.coef * loss


class MirrorMaskLoss:
    def __init__(self, coef=1.0, model_type="nerf"):
        self.coef = coef
        self.model_type = model_type  # elementwise BCE math is identical for both types

    def __call__(self, inputs, batch):
        if "mirror_mask" not in batch:
            return jnp.float32(0.0)
        preds = [inputs[f"mirror_mask_{typ}"] for typ in _TYPES
                 if f"mirror_mask_{typ}" in inputs]
        if not preds:
            return jnp.float32(0.0)
        # valid GT must be {0,1}; -1 marks invalid pixels (masked out).
        gt = jnp.reshape(batch["mirror_mask"], (-1,))
        bce_sum, _ = _fused_loss_sums(preds, gt, [], None)
        return self.coef * (bce_sum / jnp.float32(gt.shape[0]))


class NormalLoss:
    def __init__(self, coef=1e-4, normal_loss_only_inside_mirror=False):
        self.coef = coef
        self.only_inside = normal_loss_only_inside_mirror

    def __call__(self, inputs, batch, mirror_mask_has_invalid=None):
        loss = jnp.float32(0.0)
        has_mm = "mirror_mask" in batch
        if has_mm and mirror_mask_has_invalid is None:
            # TODO(synk): host sync; pass mirror_mask_has_invalid to stay jittable.
            mirror_mask_has_invalid = bool(jnp.any(batch["mirror_mask"] < 0))
        use_mask = has_mm and not mirror_mask_has_invalid
        mask = (jnp.reshape(batch["mirror_mask"], (-1,)) != 0) if use_mask else None
        for typ in _TYPES:
            key = f"normal_dif_{typ}"
            if key not in inputs:
                continue
            nd = inputs[key]
            if mask is not None:
                nd2 = jnp.reshape(nd, (mask.shape[0], -1)).astype(jnp.float32)
                k = nd2.shape[1]
                w_in = mask.astype(jnp.float32)
                w_out = 1.0 - w_in
                if not self.only_inside:
                    loss = loss + jnp.sum(nd2 * w_out[:, None]) / (jnp.sum(w_out) * k)
                loss = loss + (jnp.sum(nd2 * w_in[:, None]) / (jnp.sum(w_in) * k)) * 100.0
            else:
                loss = loss + jnp.mean(nd)
        return self.coef * loss


class NormalRegLoss:
    """normal should back-face the ray direction (Ref-NeRF style)."""

    def __init__(self, coef=1.0, ext_supervise_grad_normal=True):
        self.coef = coef
        self.ext_supervise_grad_normal = ext_supervise_grad_normal

    def __call__(self, inputs, batch):
        rays_d = jnp.reshape(batch["rays"][..., 3:6], (-1, 3))
        n = rays_d.shape[0]
        if "valid_mask" in batch:
            m = jnp.reshape(batch["valid_mask"], (-1,)).astype(jnp.float32)
        else:
            m = jnp.ones((n,), jnp.float32)
        loss = jnp.float32(0.0)

        def term(normal, weights):
            dots = jnp.sum(jax.nn.relu(normal * rays_d[:, None, :]), axis=-1)  # (N,S)
            per_elem = dots * weights
            k = per_elem.shape[1]
            return jnp.sum(per_elem * m[:, None]) / (jnp.sum(m) * k)

        for typ in _TYPES:
            if f"pred_normal_{typ}" in inputs:
                loss = loss + term(inputs[f"pred_normal_{typ}"], inputs[f"weights_{typ}"])
        if self.ext_supervise_grad_normal and "normal_fine" in inputs:
            loss = loss + term(inputs["normal_fine"], inputs["weights_fine"])
        return self.coef * loss


class PlaneConsistentLoss:
    def __init__(self, coef=0.1, rng_seed=0):
        self.coef = coef
        self._key = jax.random.PRNGKey(rng_seed)

    def _plane_loss(self, pts, mask):
        # TODO(synk): data-dependent gather (jnp.nonzero) + stateful host RNG;
        # kept in eager JAX, no clean Pallas equivalent and not jittable.
        mask = jnp.reshape(mask, (-1,)).astype(bool)
        idx = jnp.nonzero(mask)[0]
        k = int(idx.shape[0])
        times = k // 4
        if times == 0:
            return jnp.float32(0.0)
        self._key, sub = jax.random.split(self._key)
        sel = jax.random.randint(sub, (times, 4), 0, k)
        p = jnp.reshape(pts, (-1, 3))[idx[sel]]
        v1, v2, v3 = p[:, 1] - p[:, 0], p[:, 2] - p[:, 0], p[:, 3] - p[:, 0]
        vol = jnp.sum(jnp.cross(v1, v2) * v3, axis=-1)
        return jnp.mean(jnp.abs(vol))

    def __call__(self, inputs, batch, mirror_mask_has_invalid=None):
        loss = jnp.float32(0.0)
        if "mirror_mask" not in batch:
            return self.coef * loss
        if mirror_mask_has_invalid is None:
            # TODO(synk): host sync; pass mirror_mask_has_invalid to stay jittable.
            mirror_mask_has_invalid = bool(jnp.any(batch["mirror_mask"] < 0))
        if not mirror_mask_has_invalid:
            mask = jnp.reshape(batch["mirror_mask"], (-1,)) != 0
            for typ in ("fine", "coarse"):
                if f"x_surface_{typ}" in inputs:
                    loss = loss + self._plane_loss(inputs[f"x_surface_{typ}"], mask)
        return self.coef * loss


class TotalLoss:
    def __init__(self, hparams):
        self.hparams = hparams
        self.color_loss = ColorLoss(coef=hparams.color_loss_weight,
                                    woMaskRGBtoBlack=hparams.woMaskRGBtoBlack)
        self.normal_loss = NormalLoss(
            coef=hparams.normal_loss_weight,
            normal_loss_only_inside_mirror=hparams.normal_loss_only_inside_mirror)
        self.normal_reg_loss = NormalRegLoss(coef=hparams.normal_reg_loss_weight)
        self.mirror_mask_loss = MirrorMaskLoss(coef=hparams.mirror_mask_loss_weight,
                                               model_type=hparams.model_type)
        if hparams.use_plane_consistent_loss:
            self.plane_consistent_loss = PlaneConsistentLoss(
                coef=hparams.plane_consistent_loss_weight)

    def __call__(self, inputs, batch, train_geometry_stage=False, epoch=-1,
                 mirror_mask_has_invalid=None):
        hp = self.hparams
        loss_dict = {}

        if not train_geometry_stage:
            # Default path: ONE fused pallas_call covers both the color MSE and
            # the masked mirror-mask BCE (shared launch / pipeline overhead).
            rgb_preds = [inputs[f"rgb_{t}"] for t in _TYPES if f"rgb_{t}" in inputs]
            mm_preds = ([inputs[f"mirror_mask_{t}"] for t in _TYPES
                         if f"mirror_mask_{t}" in inputs]
                        if "mirror_mask" in batch else [])
            bce_sum, mse_sum = _fused_loss_sums(
                mm_preds, batch.get("mirror_mask") if mm_preds else None,
                rgb_preds, batch["rgbs"] if rgb_preds else None)
            if rgb_preds:
                n_rgb = jnp.reshape(batch["rgbs"], (-1, 3)).size
                loss_dict["color_loss"] = self.color_loss.coef * (mse_sum / jnp.float32(n_rgb))
            else:
                loss_dict["color_loss"] = jnp.float32(0.0)
            if mm_preds:
                n_mm = jnp.reshape(batch["mirror_mask"], (-1,)).shape[0]
                loss_dict["mirror_mask_loss"] = self.mirror_mask_loss.coef * (
                    bce_sum / jnp.float32(n_mm))
            else:
                loss_dict["mirror_mask_loss"] = jnp.float32(0.0)
        else:
            loss_dict["color_loss"] = self.color_loss(
                inputs, batch, train_geometry_stage, mirror_mask_has_invalid)
            if epoch >= hp.train_mirror_mask_start_epoch:
                loss_dict["mirror_mask_loss"] = self.mirror_mask_loss(inputs, batch)

        if epoch >= hp.smooth_mirror_start_epoch and hp.use_plane_consistent_loss:
            loss_dict["plane_consistent_loss"] = self.plane_consistent_loss(
                inputs, batch, mirror_mask_has_invalid)
        if (not train_geometry_stage) or epoch >= hp.train_normal_start_epoch:
            loss_dict["normal_loss"] = self.normal_loss(inputs, batch, mirror_mask_has_invalid)
            loss_dict["normal_reg_loss"] = self.normal_reg_loss(inputs, batch)

        loss_dict = {k: v for k, v in loss_dict.items() if v is not None}
        loss_sum = sum(loss_dict.values())
        return loss_sum, loss_dict


# ----------------------------------------------------------------------------
# demo / self-check
# ----------------------------------------------------------------------------
if __name__ == "__main__":
    key = jax.random.PRNGKey(0)
    keys = jax.random.split(key, 12)

    N, S = 600, 8   # N not a multiple of 128 -> exercises the ragged (1, X) path

    rgbs = jax.random.uniform(keys[0], (N, 3), dtype=jnp.float32)
    rays_o = jax.random.normal(keys[1], (N, 3), dtype=jnp.float32)
    rays_d = jax.random.normal(keys[2], (N, 3), dtype=jnp.float32)
    rays_d = rays_d / jnp.linalg.norm(rays_d, axis=-1, keepdims=True)
    rays = jnp.concatenate([rays_o, rays_d, jnp.zeros((N, 2), jnp.float32)], axis=-1)

    gt_mask = (jax.random.uniform(keys[3], (N, 1)) > 0.5).astype(jnp.float32)
    invalid = jax.random.uniform(keys[4], (N, 1)) < 0.1
    gt_mask = jnp.where(invalid, -1.0, gt_mask)        # {-1, 0, 1}

    batch = {"rgbs": rgbs, "rays": rays, "mirror_mask": gt_mask}

    def _unit(v):
        return v / jnp.linalg.norm(v, axis=-1, keepdims=True)

    kk = jax.random.split(keys[11], 5)
    inputs = {
        "rgb_coarse": jax.random.uniform(keys[5], (N, 3), dtype=jnp.float32),
        "rgb_fine": jax.random.uniform(keys[6], (N, 3), dtype=jnp.float32),
        "mirror_mask_coarse": jax.nn.sigmoid(jax.random.normal(keys[7], (N,), dtype=jnp.float32)),
        "mirror_mask_fine": jax.nn.sigmoid(jax.random.normal(keys[8], (N,), dtype=jnp.float32)),
        "normal_dif_coarse": jnp.abs(jax.random.normal(keys[9], (N,), dtype=jnp.float32)),
        "normal_dif_fine": jnp.abs(jax.random.normal(keys[10], (N,), dtype=jnp.float32)),
        "pred_normal_coarse": _unit(jax.random.normal(kk[0], (N, S, 3), dtype=jnp.float32)),
        "pred_normal_fine": _unit(jax.random.normal(kk[1], (N, S, 3), dtype=jnp.float32)),
        "normal_fine": _unit(jax.random.normal(kk[2], (N, S, 3), dtype=jnp.float32)),
        "weights_coarse": jax.nn.softmax(jax.random.normal(kk[3], (N, S), dtype=jnp.float32), axis=-1),
        "weights_fine": jax.nn.softmax(jax.random.normal(kk[4], (N, S), dtype=jnp.float32), axis=-1),
    }

    hparams = SimpleNamespace(
        color_loss_weight=1.0, woMaskRGBtoBlack=False,
        normal_loss_weight=1e-4, normal_loss_only_inside_mirror=False,
        normal_reg_loss_weight=0.1, mirror_mask_loss_weight=1.0,
        model_type="nerf",
        use_plane_consistent_loss=False, plane_consistent_loss_weight=0.1,
        train_mirror_mask_start_epoch=0, smooth_mirror_start_epoch=0,
        train_normal_start_epoch=0)

    # static flag keeps the loss free of device->host syncs
    mm_has_invalid = bool(jnp.any(gt_mask < 0))

    total_loss = TotalLoss(hparams)
    loss_sum, loss_dict = total_loss(inputs, batch, train_geometry_stage=False, epoch=0,
                                     mirror_mask_has_invalid=mm_has_invalid)
    loss_sum = jax.block_until_ready(loss_sum)

    # -------- pure-JAX reference for the Pallas-backed losses --------
    t = rgbs.reshape(-1, 3)
    ref_color = sum(jnp.mean((inputs[f"rgb_{typ}"].reshape(-1, 3) - t) ** 2)
                    for typ in _TYPES)
    gt1 = gt_mask.reshape(-1)
    valid = (gt1 >= 0).astype(jnp.float32)
    ref_mm = jnp.float32(0.0)
    for typ in _TYPES:
        p = jnp.clip(inputs[f"mirror_mask_{typ}"].reshape(-1), _EPS, 1.0 - _EPS)
        bce = -(gt1 * jnp.log(p) + (1.0 - gt1) * jnp.log(1.0 - p))
        ref_mm = ref_mm + jnp.mean(bce * valid)

    assert jnp.allclose(loss_dict["color_loss"], ref_color, rtol=1e-5, atol=1e-6), \
        (loss_dict["color_loss"], ref_color)
    assert jnp.allclose(loss_dict["mirror_mask_loss"], ref_mm, rtol=1e-5, atol=1e-6), \
        (loss_dict["mirror_mask_loss"], ref_mm)
    assert bool(jnp.isfinite(loss_sum))

    # -------- ragged / multi-step pipeline checks --------------------
    def ref_sums(mm_p, gt, rgb_p, tgt):
        g = gt.reshape(-1).astype(jnp.float32)
        v = (g >= 0).astype(jnp.float32)
        bce = jnp.float32(0.0)
        for p in mm_p:
            pc = jnp.clip(p.reshape(-1).astype(jnp.float32), _EPS, 1.0 - _EPS)
            bce = bce + jnp.sum(-(g * jnp.log(pc) + (1.0 - g) * jnp.log(1.0 - pc)) * v)
        mse = jnp.float32(0.0)
        t1 = tgt.reshape(-1).astype(jnp.float32)
        for p in rgb_p:
            mse = mse + jnp.sum((p.reshape(-1).astype(jnp.float32) - t1) ** 2)
        return bce, mse

    mm_p = [inputs["mirror_mask_coarse"], inputs["mirror_mask_fine"]]
    rgb_p = [inputs["rgb_coarse"], inputs["rgb_fine"]]

    # (a) ragged path, 3 grid steps, last block partially out-of-bounds
    k_bce, k_mse = _fused_loss_sums(mm_p, gt_mask, rgb_p, rgbs, block_rays=256)
    r_bce, r_mse = ref_sums(mm_p, gt_mask, rgb_p, rgbs)
    assert jnp.allclose(k_bce, r_bce, rtol=1e-5, atol=1e-3), (k_bce, r_bce)
    assert jnp.allclose(k_mse, r_mse, rtol=1e-5, atol=1e-3), (k_mse, r_mse)

    # (b) dense path (N % 128 == 0), 2 grid steps with an OOB tail block
    N2 = 1280
    k2 = jax.random.split(jax.random.PRNGKey(1), 6)
    rgbs2 = jax.random.uniform(k2[0], (N2, 3), dtype=jnp.float32)
    rgb_c2 = jax.random.uniform(k2[1], (N2, 3), dtype=jnp.float32)
    rgb_f2 = jax.random.uniform(k2[2], (N2, 3), dtype=jnp.float32)
    mm_c2 = jax.nn.sigmoid(jax.random.normal(k2[3], (N2,), dtype=jnp.float32))
    mm_f2 = jax.nn.sigmoid(jax.random.normal(k2[4], (N2,), dtype=jnp.float32))
    gt2 = (jax.random.uniform(k2[5], (N2, 1)) > 0.5).astype(jnp.float32)
    gt2 = jnp.where(jax.random.uniform(jax.random.PRNGKey(2), (N2, 1)) < 0.1, -1.0, gt2)

    k_bce2, k_mse2 = _fused_loss_sums([mm_c2, mm_f2], gt2, [rgb_c2, rgb_f2], rgbs2,
                                      block_rays=1024)
    r_bce2, r_mse2 = ref_sums([mm_c2, mm_f2], gt2, [rgb_c2, rgb_f2], rgbs2)
    assert jnp.allclose(k_bce2, r_bce2, rtol=1e-5, atol=1e-3), (k_bce2, r_bce2)
    assert jnp.allclose(k_mse2, r_mse2, rtol=1e-5, atol=1e-3), (k_mse2, r_mse2)

    jax.block_until_ready(k_mse2)
    print("KERNEL_OK")
</pallas_src>

<mosaic_0001>
module attributes {stable_mosaic.version = 11 : i64} {
  func.func @kernel(%arg0: i32, %arg1: memref<2xi32, #tpu.memory_space<smem>>, %arg2: memref<1x600xf32, #tpu.memory_space<vmem>>, %arg3: memref<1x600xf32, #tpu.memory_space<vmem>>, %arg4: memref<1x600xf32, #tpu.memory_space<vmem>>, %arg5: memref<1x1800xf32, #tpu.memory_space<vmem>>, %arg6: memref<1x1800xf32, #tpu.memory_space<vmem>>, %arg7: memref<1x1800xf32, #tpu.memory_space<vmem>>, %arg8: memref<8x128xf32, #tpu.memory_space<vmem>>, %arg9: memref<8x128xf32, #tpu.memory_space<vmem>>, %arg10: memref<2xf32, #tpu.memory_space<smem>>) attributes {dimension_semantics = [#tpu.dimension_semantics<arbitrary>], iteration_bounds = array<i64: 1>, scalar_prefetch = 1 : i64, scratch_operands = 1 : i64, tpu.core_type = #tpu.core_type<tc>, window_params = [{transform_indices = @transform_0, window_bounds = array<i64: 1, 600>}, {transform_indices = @transform_1, window_bounds = array<i64: 1, 600>}, {transform_indices = @transform_2, window_bounds = array<i64: 1, 600>}, {transform_indices = @transform_3, window_bounds = array<i64: 1, 1800>}, {transform_indices = @transform_4, window_bounds = array<i64: 1, 1800>}, {transform_indices = @transform_5, window_bounds = array<i64: 1, 1800>}, {pipeline_mode = #tpu.pipeline_mode<synchronous>, transform_indices = @transform_6, window_bounds = array<i64: 8, 128>}, {pipeline_mode = #tpu.pipeline_mode<synchronous>, transform_indices = @transform_7, window_bounds = array<i64: 8, 128>}]} {
    %c0_i32 = arith.constant 0 : i32
    %0 = arith.cmpi eq, %arg0, %c0_i32 : i32
    %1 = arith.extui %0 : i1 to i32
    %c0_i32_0 = arith.constant 0 : i32
    %2 = arith.cmpi ne, %1, %c0_i32_0 : i32
    scf.if %2 {
      %cst_32 = arith.constant 0.000000e+00 : f32
      %c0_33 = arith.constant 0 : index
      %75 = memref.load %arg10[%c0_33] : memref<2xf32, #tpu.memory_space<smem>>
      memref.store %cst_32, %arg10[%c0_33] : memref<2xf32, #tpu.memory_space<smem>>
      %cst_34 = arith.constant 0.000000e+00 : f32
      %c1_35 = arith.constant 1 : index
      %76 = memref.load %arg10[%c1_35] : memref<2xf32, #tpu.memory_space<smem>>
      memref.store %cst_34, %arg10[%c1_35] : memref<2xf32, #tpu.memory_space<smem>>
    } else {
    }
    %c0 = arith.constant 0 : index
    %c0_1 = arith.constant 0 : index
    %3 = vector.load %arg4[%c0, %c0_1] : memref<1x600xf32, #tpu.memory_space<vmem>>, vector<1x600xf32>
    %cst = arith.constant 5.000000e-01 : f32
    %4 = vector.broadcast %cst : f32 to vector<1x600xf32>
    %5 = arith.cmpf ogt, %3, %4 : vector<1x600xf32>
    %c0_2 = arith.constant 0 : index
    %c0_3 = arith.constant 0 : index
    %6 = vector.load %arg2[%c0_2, %c0_3] : memref<1x600xf32, #tpu.memory_space<vmem>>, vector<1x600xf32>
    %cst_4 = arith.constant 1.000000e-07 : f32
    %cst_5 = arith.constant 0.99999988 : f32
    %7 = vector.broadcast %cst_4 : f32 to vector<1x600xf32>
    %8 = arith.maximumf %7, %6 : vector<1x600xf32>
    %9 = vector.broadcast %cst_5 : f32 to vector<1x600xf32>
    %10 = arith.minimumf %9, %8 : vector<1x600xf32>
    %cst_6 = arith.constant 1.000000e+00 : f32
    %11 = vector.broadcast %cst_6 : f32 to vector<1x600xf32>
    %12 = arith.subf %11, %10 : vector<1x600xf32>
    %13 = arith.select %5, %10, %12 : vector<1x600xi1>, vector<1x600xf32>
    %14 = math.log %13 : vector<1x600xf32>
    %cst_7 = arith.constant 0.000000e+00 : f32
    %15 = vector.broadcast %cst_7 : f32 to vector<1x600xf32>
    %16 = arith.subf %15, %14 : vector<1x600xf32>
    %c0_8 = arith.constant 0 : index
    %c0_9 = arith.constant 0 : index
    %17 = vector.load %arg3[%c0_8, %c0_9] : memref<1x600xf32, #tpu.memory_space<vmem>>, vector<1x600xf32>
    %cst_10 = arith.constant 1.000000e-07 : f32
    %cst_11 = arith.constant 0.99999988 : f32
    %18 = vector.broadcast %cst_10 : f32 to vector<1x600xf32>
    %19 = arith.maximumf %18, %17 : vector<1x600xf32>
    %20 = vector.broadcast %cst_11 : f32 to vector<1x600xf32>
    %21 = arith.minimumf %20, %19 : vector<1x600xf32>
    %cst_12 = arith.constant 1.000000e+00 : f32
    %22 = vector.broadcast %cst_12 : f32 to vector<1x600xf32>
    %23 = arith.subf %22, %21 : vector<1x600xf32>
    %24 = arith.select %5, %21, %23 : vector<1x600xi1>, vector<1x600xf32>
    %25 = math.log %24 : vector<1x600xf32>
    %cst_13 = arith.constant 0.000000e+00 : f32
    %26 = vector.broadcast %cst_13 : f32 to vector<1x600xf32>
    %27 = arith.subf %26, %25 : vector<1x600xf32>
    %28 = arith.addf %16, %27 : vector<1x600xf32>
    %29 = tpu.iota {dimensions = array<i32: 1>} : vector<1x600xi32>
    %c600_i32 = arith.constant 600 : i32
    %30 = arith.muli %arg0, %c600_i32 : i32
    %31 = vector.broadcast %30 : i32 to vector<1x600xi32>
    %32 = arith.addi %31, %29 : vector<1x600xi32>
    %c0_14 = arith.constant 0 : index
    %33 = memref.load %arg1[%c0_14] : memref<2xi32, #tpu.memory_space<smem>>
    %34 = vector.broadcast %33 : i32 to vector<1x600xi32>
    %35 = arith.cmpi slt, %32, %34 : vector<1x600xi32>
    %cst_15 = arith.constant 0.000000e+00 : f32
    %36 = vector.broadcast %cst_15 : f32 to vector<1x600xf32>
    %37 = arith.cmpf oge, %3, %36 : vector<1x600xf32>
    %38 = arith.andi %35, %37 : vector<1x600xi1>
    %c0_16 = arith.constant 0 : index
    %39 = memref.load %arg10[%c0_16] : memref<2xf32, #tpu.memory_space<smem>>
    %cst_17 = arith.constant 0.000000e+00 : f32
    %40 = vector.broadcast %cst_17 : f32 to vector<1x600xf32>
    %41 = arith.select %38, %28, %40 : vector<1x600xi1>, vector<1x600xf32>
    %42 = vector.shape_cast %41 : vector<1x600xf32> to vector<1x1x600xf32>
    %cst_18 = arith.constant dense<0.000000e+00> : vector<1xf32>
    %43 = vector.multi_reduction <add>, %42, %cst_18 [1, 2] : vector<1x1x600xf32> to vector<1xf32>
    %44 = vector.shape_cast %43 : vector<1xf32> to vector<1x1x1xf32>
    %45 = vector.extract %44[0, 0, 0] : f32 from vector<1x1x1xf32>
    %46 = arith.addf %39, %45 : f32
    %c0_19 = arith.constant 0 : index
    %47 = memref.load %arg10[%c0_19] : memref<2xf32, #tpu.memory_space<smem>>
    memref.store %46, %arg10[%c0_19] : memref<2xf32, #tpu.memory_space<smem>>
    %c0_20 = arith.constant 0 : index
    %c0_21 = arith.constant 0 : index
    %48 = vector.load %arg7[%c0_20, %c0_21] : memref<1x1800xf32, #tpu.memory_space<vmem>>, vector<1x1800xf32>
    %c0_22 = arith.constant 0 : index
    %c0_23 = arith.constant 0 : index
    %49 = vector.load %arg5[%c0_22, %c0_23] : memref<1x1800xf32, #tpu.memory_space<vmem>>, vector<1x1800xf32>
    %50 = arith.subf %49, %48 : vector<1x1800xf32>
    %51 = arith.mulf %50, %50 : vector<1x1800xf32>
    %c0_24 = arith.constant 0 : index
    %c0_25 = arith.constant 0 : index
    %52 = vector.load %arg6[%c0_24, %c0_25] : memref<1x1800xf32, #tpu.memory_space<vmem>>, vector<1x1800xf32>
    %53 = arith.subf %52, %48 : vector<1x1800xf32>
    %54 = arith.mulf %53, %53 : vector<1x1800xf32>
    %55 = arith.addf %51, %54 : vector<1x1800xf32>
    %56 = tpu.iota {dimensions = array<i32: 1>} : vector<1x1800xi32>
    %c1800_i32 = arith.constant 1800 : i32
    %57 = arith.muli %arg0, %c1800_i32 : i32
    %58 = vector.broadcast %57 : i32 to vector<1x1800xi32>
    %59 = arith.addi %58, %56 : vector<1x1800xi32>
    %c1 = arith.constant 1 : index
    %60 = memref.load %arg1[%c1] : memref<2xi32, #tpu.memory_space<smem>>
    %61 = vector.broadcast %60 : i32 to vector<1x1800xi32>
    %62 = arith.cmpi slt, %59, %61 : vector<1x1800xi32>
    %c1_26 = arith.constant 1 : index
    %63 = memref.load %arg10[%c1_26] : memref<2xf32, #tpu.memory_space<smem>>
    %cst_27 = arith.constant 0.000000e+00 : f32
    %64 = vector.broadcast %cst_27 : f32 to vector<1x1800xf32>
    %65 = arith.select %62, %55, %64 : vector<1x1800xi1>, vector<1x1800xf32>
    %66 = vector.shape_cast %65 : vector<1x1800xf32> to vector<1x1x1800xf32>
    %cst_28 = arith.constant dense<0.000000e+00> : vector<1xf32>
    %67 = vector.multi_reduction <add>, %66, %cst_28 [1, 2] : vector<1x1x1800xf32> to vector<1xf32>
    %68 = vector.shape_cast %67 : vector<1xf32> to vector<1x1x1xf32>
    %69 = vector.extract %68[0, 0, 0] : f32 from vector<1x1x1xf32>
    %70 = arith.addf %63, %69 : f32
    %c1_29 = arith.constant 1 : index
    %71 = memref.load %arg10[%c1_29] : memref<2xf32, #tpu.memory_space<smem>>
    memref.store %70, %arg10[%c1_29] : memref<2xf32, #tpu.memory_space<smem>>
    %c0_i32_30 = arith.constant 0 : i32
    %72 = arith.cmpi eq, %arg0, %c0_i32_30 : i32
    %73 = arith.extui %72 : i1 to i32
    %c0_i32_31 = arith.constant 0 : i32
    %74 = arith.cmpi ne, %73, %c0_i32_31 : i32
    scf.if %74 {
      %c0_32 = arith.constant 0 : index
      %75 = memref.load %arg10[%c0_32] : memref<2xf32, #tpu.memory_space<smem>>
      %76 = vector.broadcast %75 : f32 to vector<8x128xf32>
      %c0_33 = arith.constant 0 : index
      %c0_34 = arith.constant 0 : index
      %77 = vector.load %arg8[%c0_33, %c0_34] : memref<8x128xf32, #tpu.memory_space<vmem>>, vector<8x128xf32>
      tpu.vector_store %arg8[%c0_33, %c0_34], %76 {strides = array<i32>} : memref<8x128xf32, #tpu.memory_space<vmem>>, vector<8x128xf32>,
      %c1_35 = arith.constant 1 : index
      %78 = memref.load %arg10[%c1_35] : memref<2xf32, #tpu.memory_space<smem>>
      %79 = vector.broadcast %78 : f32 to vector<8x128xf32>
      %c0_36 = arith.constant 0 : index
      %c0_37 = arith.constant 0 : index
      %80 = vector.load %arg9[%c0_36, %c0_37] : memref<8x128xf32, #tpu.memory_space<vmem>>, vector<8x128xf32>
      tpu.vector_store %arg9[%c0_36, %c0_37], %79 {strides = array<i32>} : memref<8x128xf32, #tpu.memory_space<vmem>>, vector<8x128xf32>,
    } else {
    }
    return
  }
  func.func @transform_0(%arg0: i32, %arg1: memref<2xi32, #tpu.memory_space<smem>>) -> (i32, i32) {
    %c0_i32 = arith.constant 0 : i32
    %c0_i32_0 = arith.constant 0 : i32
    return %c0_i32, %arg0 : i32, i32
  }
  func.func @transform_1(%arg0: i32, %arg1: memref<2xi32, #tpu.memory_space<smem>>) -> (i32, i32) {
    %c0_i32 = arith.constant 0 : i32
    %c0_i32_0 = arith.constant 0 : i32
    return %c0_i32, %arg0 : i32, i32
  }
  func.func @transform_2(%arg0: i32, %arg1: memref<2xi32, #tpu.memory_space<smem>>) -> (i32, i32) {
    %c0_i32 = arith.constant 0 : i32
    %c0_i32_0 = arith.constant 0 : i32
    return %c0_i32, %arg0 : i32, i32
  }
  func.func @transform_3(%arg0: i32, %arg1: memref<2xi32, #tpu.memory_space<smem>>) -> (i32, i32) {
    %c0_i32 = arith.constant 0 : i32
    %c0_i32_0 = arith.constant 0 : i32
    return %c0_i32, %arg0 : i32, i32
  }
  func.func @transform_4(%arg0: i32, %arg1: memref<2xi32, #tpu.memory_space<smem>>) -> (i32, i32) {
    %c0_i32 = arith.constant 0 : i32
    %c0_i32_0 = arith.constant 0 : i32
    return %c0_i32, %arg0 : i32, i32
  }
  func.func @transform_5(%arg0: i32, %arg1: memref<2xi32, #tpu.memory_space<smem>>) -> (i32, i32) {
    %c0_i32 = arith.constant 0 : i32
    %c0_i32_0 = arith.constant 0 : i32
    return %c0_i32, %arg0 : i32, i32
  }
  func.func @transform_6(%arg0: i32, %arg1: memref<2xi32, #tpu.memory_space<smem>>) -> (i32, i32) {
    %c0_i32 = arith.constant 0 : i32
    %c0_i32_0 = arith.constant 0 : i32
    %c0_i32_1 = arith.constant 0 : i32
    return %c0_i32, %c0_i32_0 : i32, i32
  }
  func.func @transform_7(%arg0: i32, %arg1: memref<2xi32, #tpu.memory_space<smem>>) -> (i32, i32) {
    %c0_i32 = arith.constant 0 : i32
    %c0_i32_0 = arith.constant 0 : i32
    %c0_i32_1 = arith.constant 0 : i32
    return %c0_i32, %c0_i32_0 : i32, i32
  }
}

</mosaic_0001>

<llo_original>
// kernel: tpu_custom_call.1
$region0: #{tpu_custom_call.1}
  #allocation0 [shape = 'u32[]', space=smem, size = 0x4, offset = 0x4, fixed_abs, tag = 'smem constant byte address 0x4 - core index']
  #allocation1 [shape = 'u32[144,128]{1,0:T(1,128)}', space=vmem, size = 0x12000, scoped, tag = 'internal scratch']
  #allocation2 [shape = 'f32[2]{0:T(128)}', space=smem, size = 0x200, scoped, tag = 'scratch operand']
  #allocation3 [shape = 's32[1]{0}', space=sflag, size = 0x4, scoped, tag = 'scoped memory for tpu_custom_call.1']
  #allocation4 [shape = 'u8[512]{0}', space=smem, size = 0x200, scoped, tag = 'prefetched SMEM operand 0']
  %s0 = inlined_call_operand.hbm [shape: s32[2], index: 0, kind: input, shape index: {}]
  %s1 = inlined_call_operand.hbm [shape: f32[1,600], index: 1, kind: input, shape index: {}]
  %s2 = inlined_call_operand.hbm [shape: f32[1,600], index: 2, kind: input, shape index: {}]
  %s3 = inlined_call_operand.hbm [shape: f32[1,600], index: 3, kind: input, shape index: {}]
  %s4 = inlined_call_operand.vmem [shape: f32[1,1800], index: 4, kind: input, shape index: {}]
  %s5 = inlined_call_operand.hbm [shape: f32[1,1800], index: 5, kind: input, shape index: {}]
  %s6 = inlined_call_operand.hbm [shape: f32[1,1800], index: 6, kind: input, shape index: {}]
  %s7 = inlined_call_operand.hbm [shape: f32[8,128], index: 7, kind: output, shape index: {0}]
  %s8 = inlined_call_operand.hbm [shape: f32[8,128], index: 8, kind: output, shape index: {1}]
  %9 = xla_tuple %s7, %s8
  %s10 = sld [smem:[#allocation0]]
  $region70: #{tpu_custom_call.1} parent=0
    _
  %s12 = ssub.s32 1, %s10
  %s13 = scalar_select 0, %s12, %s10
  %15 = dma.hbm_to_smem %s0, 16, [#allocation4], [#allocation3]
  %16 = dma.done [#allocation3], 16
  %17 = sfence
  $region1: #{tpu_custom_call.1} parent=0
    #allocation5 [shape = 'u8[2560]{0}', space=vmem, size = 0xc00, scoped, tag = 'input window, operand 1, single buffered']
    #allocation6 [shape = 's32[1]{0}', space=sflag, size = 0x4, scoped, tag = 'scoped memory for tpu_custom_call.1']
    #allocation7 [shape = 's32[1]{0}', space=sflag, size = 0x4, scoped, tag = 'scoped memory for tpu_custom_call.1']
    #allocation8 [shape = 'u8[2560]{0}', space=vmem, size = 0xc00, scoped, tag = 'input window, operand 2, single buffered']
    #allocation9 [shape = 's32[1]{0}', space=sflag, size = 0x4, scoped, tag = 'scoped memory for tpu_custom_call.1']
    #allocation10 [shape = 'u8[2560]{0}', space=vmem, size = 0xc00, scoped, tag = 'input window, operand 3, single buffered']
    #allocation11 [shape = 'u8[7680]{0}', space=vmem, size = 0x2000, scoped, tag = 'input window, operand 5, single buffered']
    #allocation12 [shape = 's32[1]{0}', space=sflag, size = 0x4, scoped, tag = 'scoped memory for tpu_custom_call.1']
    #allocation13 [shape = 'u8[7680]{0}', space=vmem, size = 0x2000, scoped, tag = 'input window, operand 6, single buffered']
    #allocation14 [shape = 'u8[4096]{0}', space=vmem, size = 0x1000, scoped, tag = 'output window, operand 0, single buffered']
    #allocation15 [shape = 'u8[4096]{0}', space=vmem, size = 0x1000, scoped, tag = 'output window, operand 1, single buffered']
    #allocation16 [shape = 's32[1]{0}', space=sflag, size = 0x4, scoped, tag = 'scoped memory for tpu_custom_call.1']
    %18 = vsyncpa [#allocation6], 0
    %19 = vsyncpa [#allocation9], 0
    %20 = vsyncpa [#allocation12], 0
    %21 = vsyncpa [#allocation7], 0
    %22 = vsyncpa [#allocation16], 0
    // Predicated region
    $region2: #{tpu_custom_call.1} parent=1 // pred_check
      _
    $region3: #{tpu_custom_call.1} parent=1 // pred_check_branch
      %24 = sbr.rel (0) target = $region5
    $region4: #{tpu_custom_call.1} parent=1 // pred_region
      %s26 = ssub.s32 80, 80
      %27 = vsyncadd [#allocation6], %s26
      %s29 = sshll.u32 [#allocation5], 4
      %s30 = int_to_ptr.vmem [resolvable:$true] %s29
      %32 = dma.hbm_to_vmem [thread:$0]  %s1, 80, %s30, [#allocation6]
    $region5: #{tpu_custom_call.1} parent=1 // pred_fallthru
      _
    // Predicated region
    $region6: #{tpu_custom_call.1} parent=1 // pred_check
      _
    $region7: #{tpu_custom_call.1} parent=1 // pred_check_branch
      %34 = sbr.rel (0) target = $region9
    $region8: #{tpu_custom_call.1} parent=1 // pred_region
      %s36 = ssub.s32 80, 80
      %37 = vsyncadd [#allocation9], %s36
      %s39 = sshll.u32 [#allocation8], 4
      %s40 = int_to_ptr.vmem [resolvable:$true] %s39
      %42 = dma.hbm_to_vmem [thread:$0]  %s2, 80, %s40, [#allocation9]
    $region9: #{tpu_custom_call.1} parent=1 // pred_fallthru
      _
    // Predicated region
    $region10: #{tpu_custom_call.1} parent=1 // pred_check
      _
    $region11: #{tpu_custom_call.1} parent=1 // pred_check_branch
      %44 = sbr.rel (0) target = $region13
    $region12: #{tpu_custom_call.1} parent=1 // pred_region
      %s46 = ssub.s32 80, 80
      %47 = vsyncadd [#allocation9], %s46
      %s49 = sshll.u32 [#allocation10], 4
      %s50 = int_to_ptr.vmem [resolvable:$true] %s49
      %52 = dma.hbm_to_vmem [thread:$0]  %s3, 80, %s50, [#allocation9]
    $region13: #{tpu_custom_call.1} parent=1 // pred_fallthru
      _
    // Predicated region
    $region14: #{tpu_custom_call.1} parent=1 // pred_check
      _
    $region15: #{tpu_custom_call.1} parent=1 // pred_check_branch
      %54 = sbr.rel (0) target = $region17
    $region16: #{tpu_custom_call.1} parent=1 // pred_region
      _
    $region17: #{tpu_custom_call.1} parent=1 // pred_fallthru
      _
    // Predicated region
    $region18: #{tpu_custom_call.1} parent=1 // pred_check
      _
    $region19: #{tpu_custom_call.1} parent=1 // pred_check_branch
      %56 = sbr.rel (0) target = $region21
    $region20: #{tpu_custom_call.1} parent=1 // pred_region
      %s58 = ssub.s32 240, 240
      %59 = vsyncadd [#allocation12], %s58
      %s61 = sshll.u32 [#allocation11], 4
      %s62 = int_to_ptr.vmem [resolvable:$true] %s61
      %64 = dma.hbm_to_vmem [thread:$0]  %s5, 240, %s62, [#allocation12]
    $region21: #{tpu_custom_call.1} parent=1 // pred_fallthru
      _
    // Predicated region
    $region22: #{tpu_custom_call.1} parent=1 // pred_check
      _
    $region23: #{tpu_custom_call.1} parent=1 // pred_check_branch
      %66 = sbr.rel (0) target = $region25
    $region24: #{tpu_custom_call.1} parent=1 // pred_region
      %s68 = ssub.s32 240, 240
      %69 = vsyncadd [#allocation12], %s68
      %s71 = sshll.u32 [#allocation13], 4
      %s72 = int_to_ptr.vmem [resolvable:$true] %s71
      %74 = dma.hbm_to_vmem [thread:$0]  %s6, 240, %s72, [#allocation12]
    $region25: #{tpu_custom_call.1} parent=1 // pred_fallthru
      _
    // Predicated region
    $region26: #{tpu_custom_call.1} parent=1 // pred_check
      _
    $region27: #{tpu_custom_call.1} parent=1 // pred_check_branch
      %76 = sbr.rel (0) target = $region29
    $region28: #{tpu_custom_call.1} parent=1 // pred_region
      %77 = dma.done [#allocation6], 80
    $region29: #{tpu_custom_call.1} parent=1 // pred_fallthru
      _
    // Predicated region
    $region30: #{tpu_custom_call.1} parent=1 // pred_check
      _
    $region31: #{tpu_custom_call.1} parent=1 // pred_check_branch
      %79 = sbr.rel (0) target = $region33
    $region32: #{tpu_custom_call.1} parent=1 // pred_region
      %80 = dma.done [#allocation9], 80
    $region33: #{tpu_custom_call.1} parent=1 // pred_fallthru
      _
    // Predicated region
    $region34: #{tpu_custom_call.1} parent=1 // pred_check
      _
    $region35: #{tpu_custom_call.1} parent=1 // pred_check_branch
      %82 = sbr.rel (0) target = $region37
    $region36: #{tpu_custom_call.1} parent=1 // pred_region
      %83 = dma.done [#allocation9], 80
    $region37: #{tpu_custom_call.1} parent=1 // pred_fallthru
      _
    // Predicated region
    $region38: #{tpu_custom_call.1} parent=1 // pred_check
      _
    $region39: #{tpu_custom_call.1} parent=1 // pred_check_branch
      %85 = sbr.rel (0) target = $region41
    $region40: #{tpu_custom_call.1} parent=1 // pred_region
      %86 = dma.done [#allocation12], 240
    $region41: #{tpu_custom_call.1} parent=1 // pred_fallthru
      _
    // Predicated region
    $region42: #{tpu_custom_call.1} parent=1 // pred_check
      _
    $region43: #{tpu_custom_call.1} parent=1 // pred_check_branch
      %88 = sbr.rel (0) target = $region45
    $region44: #{tpu_custom_call.1} parent=1 // pred_region
      %89 = dma.done [#allocation12], 240
    $region45: #{tpu_custom_call.1} parent=1 // pred_fallthru
      _
    %p90 = scmp.eq.s32.totalorder 0, 0
    // Predicated region
    $region46: #{tpu_custom_call.1} parent=1 // pred_check
      %p91 = pneg %p90
    $region47: #{tpu_custom_call.1} parent=1 // pred_check_branch
      %93 = sbr.rel (%p91) target = $region49
    $region48: #{tpu_custom_call.1} parent=1 // pred_region
      %s94 = scalar_lea.smem [#allocation2], 0
      %95 = sst [smem:[%s94]] 0.0
      %s96 = scalar_lea.smem [#allocation2], 1
      %97 = sst [smem:[%s96]] 0.0
    $region49: #{tpu_custom_call.1} parent=1 // pred_fallthru
      _
    %v98 = vld [vmem:[#allocation10] sm:$0x1f]
    %vm99 = vcmp.gt.f32.partialorder %v98, 0.5
    %v100 = vld [vmem:[#allocation5] sm:$0x1f]
    %v101 = vmax.f32 %v100, 1e-07
    %v102 = vmin.f32 %v101, 0.9999999
    %v103 = vsub.f32 1.0, %v102
    %v104 = vsel %vm99, %v102, %v103
    %v105 = vlog2.pop %v104
    %v106 = vmul.f32 %v105, 0.6931472
    %v107 = vsub.f32 0.0, %v106
    %v108 = vld [vmem:[#allocation8] sm:$0x1f]
    %v109 = vmax.f32 %v108, 1e-07
    %v110 = vmin.f32 %v109, 0.9999999
    %v111 = vsub.f32 1.0, %v110
    %v112 = vsel %vm99, %v110, %v111
    %v113 = vlog2.pop %v112
    %v114 = vmul.f32 %v113, 0.6931472
    %v115 = vsub.f32 0.0, %v114
    %v116 = vadd.f32 %v107, %v115
    %v117 = vlaneseq
    %v118 = vand.u32 %v117, 127
    %v119 = vadd.s32 %v118, 128
    %v120 = vadd.s32 %v118, 256
    %v121 = vadd.s32 %v118, 384
    %v122 = vadd.s32 %v118, 512
    %s123 = smul.u32 0, 600
    %v124 = vstv %s123
    %v125 = vadd.s32 %v124, %v118
    %v126 = vadd.s32 %v124, %v119
    %v127 = vadd.s32 %v124, %v120
    %v128 = vadd.s32 %v124, %v121
    %v129 = vadd.s32 %v124, %v122
    %s130 = sld [smem:[#allocation4]]
    %v131 = vstv %s130
    %vm132 = vcmp.lt.s32.totalorder %v125, %v131
    %vm133 = vcmp.lt.s32.totalorder %v126, %v131
    %vm134 = vcmp.lt.s32.totalorder %v127, %v131
    %vm135 = vcmp.lt.s32.totalorder %v128, %v131
    %vm136 = vcmp.lt.s32.totalorder %v129, %v131
    %vm137 = vcmp.ge.f32.partialorder %v98, 0.0
    %v138 = vsel %vm137, 1, 0
    %v139 = vlaneseq
    %v140 = vshrl.u32 %v139, 7
    %v141 = vsub.s32 0, %v140
    %v142 = vrot.slane %v138, %v141
    %v143 = vlaneseq
    %v144 = vshrl.u32 %v143, 7
    %v145 = vsub.s32 1, %v144
    %v146 = vrot.slane %v138, %v145
    %v147 = vlaneseq
    %v148 = vshrl.u32 %v147, 7
    %v149 = vsub.s32 2, %v148
    %v150 = vrot.slane %v138, %v149
    %v151 = vlaneseq
    %v152 = vshrl.u32 %v151, 7
    %v153 = vsub.s32 3, %v152
    %v154 = vrot.slane %v138, %v153
    %v155 = vlaneseq
    %v156 = vshrl.u32 %v155, 7
    %v157 = vsub.s32 4, %v156
    %v158 = vrot.slane %v138, %v157
    %vm159 = vcmp.ne.s32.totalorder %v142, 0
    %vm160 = vcmp.ne.s32.totalorder %v146, 0
    %vm161 = vcmp.ne.s32.totalorder %v150, 0
    %vm162 = vcmp.ne.s32.totalorder %v154, 0
    %vm163 = vcmp.ne.s32.totalorder %v158, 0
    %vm164 = vmand %vm132, %vm159
    %vm165 = vmand %vm133, %vm160
    %vm166 = vmand %vm134, %vm161
    %vm167 = vmand %vm135, %vm162
    %vm168 = vmand %vm136, %vm163
    %s169 = sld [smem:[#allocation2]]
    %v171 = vlaneseq
    %v172 = vshrl.u32 %v171, 7
    %v173 = vsub.s32 0, %v172
    %v174 = vrot.slane %v116, %v173
    %v175 = vlaneseq
    %v176 = vshrl.u32 %v175, 7
    %v177 = vsub.s32 1, %v176
    %v178 = vrot.slane %v116, %v177
    %v179 = vlaneseq
    %v180 = vshrl.u32 %v179, 7
    %v181 = vsub.s32 2, %v180
    %v182 = vrot.slane %v116, %v181
    %v183 = vlaneseq
    %v184 = vshrl.u32 %v183, 7
    %v185 = vsub.s32 3, %v184
    %v186 = vrot.slane %v116, %v185
    %v187 = vlaneseq
    %v188 = vshrl.u32 %v187, 7
    %v189 = vsub.s32 4, %v188
    %v190 = vrot.slane %v116, %v189
    %v196 = vsel %vm164, %v174, 0.0
    %v197 = vsel %vm165, %v178, 0.0
    %v198 = vsel %vm166, %v182, 0.0
    %v199 = vsel %vm167, %v186, 0.0
    %v200 = vsel %vm168, %v190, 0.0
    %vm201 = vcmask 1040384
    %v202 = vsel %vm201, %v196, 0.0
    %v203 = vsel %vm201, %v197, 0.0
    %v204 = vadd.f32 %v202, %v203
    %v205 = vsel %vm201, %v198, 0.0
    %v206 = vadd.f32 %v204, %v205
    %v207 = vsel %vm201, %v199, 0.0
    %v208 = vadd.f32 %v206, %v207
    %vm209 = vcmask 712704
    %v210 = vsel %vm209, %v200, 0.0
    %v211 = vadd.f32 %v208, %v210
    %212 = vadd.xlane.f32.xlu0 %v211
    %v213 = vpop.xlane.xlu0 %212
    %v214 = vrot.slane %v213, 4
    %v215 = vadd.f32 %v213, %v214
    %v216 = vrot.slane %v215, 2
    %v217 = vadd.f32 %v215, %v216
    %v218 = vrot.slane %v217, 1
    %v219 = vadd.f32 %v217, %v218
    %s220 = vtos %v219
    %s221 = sadd.f32 %s169, %s220
    %s222 = scalar_lea.smem [#allocation2], 0
    %223 = sst [smem:[%s222]] %s221
    %v224 = vld [vmem:[#allocation13] sm:$0xff]
    %v225 = vld [vmem:[#allocation13 + $0x8] sm:$0x7f]
    %v226 = vld [vmem:[%s4] sm:$0xff]
    %v227 = vld [vmem:[%s4 + $0x8] sm:$0x7f]
    %v228 = vsub.f32 %v226, %v224
    %v229 = vsub.f32 %v227, %v225
    %v230 = vmul.f32 %v228, %v228
    %v231 = vmul.f32 %v229, %v229
    %v232 = vld [vmem:[#allocation11] sm:$0xff]
    %v233 = vld [vmem:[#allocation11 + $0x8] sm:$0x7f]
    %v234 = vsub.f32 %v232, %v224
    %v235 = vsub.f32 %v233, %v225
    %v236 = vmul.f32 %v234, %v234
    %v237 = vmul.f32 %v235, %v235
    %v238 = vadd.f32 %v230, %v236
    %v239 = vadd.f32 %v231, %v237
    %v240 = vadd.s32 %v118, 640
    %v241 = vadd.s32 %v118, 768
    %v242 = vadd.s32 %v118, 896
    %v243 = vadd.s32 %v118, 1024
    %v244 = vadd.s32 %v118, 1152
    %v245 = vadd.s32 %v118, 1280
    %v246 = vadd.s32 %v118, 1408
    %v247 = vadd.s32 %v118, 1536
    %v248 = vadd.s32 %v118, 1664
    %v249 = vadd.s32 %v118, 1792
    %s250 = smul.u32 0, 1800
    %v251 = vstv %s250
    %v252 = vadd.s32 %v251, %v118
    %v253 = vadd.s32 %v251, %v119
    %v254 = vadd.s32 %v251, %v120
    %v255 = vadd.s32 %v251, %v121
    %v256 = vadd.s32 %v251, %v122
    %v257 = vadd.s32 %v251, %v240
    %v258 = vadd.s32 %v251, %v241
    %v259 = vadd.s32 %v251, %v242
    %v260 = vadd.s32 %v251, %v243
    %v261 = vadd.s32 %v251, %v244
    %v262 = vadd.s32 %v251, %v245
    %v263 = vadd.s32 %v251, %v246
    %v264 = vadd.s32 %v251, %v247
    %v265 = vadd.s32 %v251, %v248
    %v266 = vadd.s32 %v251, %v249
    %s267 = sld [smem:[#allocation4 + $0x1]]
    %v268 = vstv %s267
    %vm269 = vcmp.lt.s32.totalorder %v252, %v268
    %vm270 = vcmp.lt.s32.totalorder %v253, %v268
    %vm271 = vcmp.lt.s32.totalorder %v254, %v268
    %vm272 = vcmp.lt.s32.totalorder %v255, %v268
    %vm273 = vcmp.lt.s32.totalorder %v256, %v268
    %vm274 = vcmp.lt.s32.totalorder %v257, %v268
    %vm275 = vcmp.lt.s32.totalorder %v258, %v268
    %vm276 = vcmp.lt.s32.totalorder %v259, %v268
    %vm277 = vcmp.lt.s32.totalorder %v260, %v268
    %vm278 = vcmp.lt.s32.totalorder %v261, %v268
    %vm279 = vcmp.lt.s32.totalorder %v262, %v268
    %vm280 = vcmp.lt.s32.totalorder %v263, %v268
    %vm281 = vcmp.lt.s32.totalorder %v264, %v268
    %vm282 = vcmp.lt.s32.totalorder %v265, %v268
    %vm283 = vcmp.lt.s32.totalorder %v266, %v268
    %s284 = sld [smem:[#allocation2 + $0x1]]
    %v287 = vlaneseq
    %v288 = vshrl.u32 %v287, 7
    %v289 = vsub.s32 0, %v288
    %v290 = vrot.slane %v238, %v289
    %v291 = vlaneseq
    %v292 = vshrl.u32 %v291, 7
    %v293 = vsub.s32 1, %v292
    %v294 = vrot.slane %v238, %v293
    %v295 = vlaneseq
    %v296 = vshrl.u32 %v295, 7
    %v297 = vsub.s32 2, %v296
    %v298 = vrot.slane %v238, %v297
    %v299 = vlaneseq
    %v300 = vshrl.u32 %v299, 7
    %v301 = vsub.s32 3, %v300
    %v302 = vrot.slane %v238, %v301
    %v303 = vlaneseq
    %v304 = vshrl.u32 %v303, 7
    %v305 = vsub.s32 4, %v304
    %v306 = vrot.slane %v238, %v305
    %v307 = vlaneseq
    %v308 = vshrl.u32 %v307, 7
    %v309 = vsub.s32 5, %v308
    %v310 = vrot.slane %v238, %v309
    %v311 = vlaneseq
    %v312 = vshrl.u32 %v311, 7
    %v313 = vsub.s32 6, %v312
    %v314 = vrot.slane %v238, %v313
    %v315 = vlaneseq
    %v316 = vshrl.u32 %v315, 7
    %v317 = vsub.s32 7, %v316
    %v318 = vrot.slane %v238, %v317
    %v319 = vlaneseq
    %v320 = vshrl.u32 %v319, 7
    %v321 = vsub.s32 0, %v320
    %v322 = vrot.slane %v239, %v321
    %v323 = vlaneseq
    %v324 = vshrl.u32 %v323, 7
    %v325 = vsub.s32 1, %v324
    %v326 = vrot.slane %v239, %v325
    %v327 = vlaneseq
    %v328 = vshrl.u32 %v327, 7
    %v329 = vsub.s32 2, %v328
    %v330 = vrot.slane %v239, %v329
    %v331 = vlaneseq
    %v332 = vshrl.u32 %v331, 7
    %v333 = vsub.s32 3, %v332
    %v334 = vrot.slane %v239, %v333
    %v335 = vlaneseq
    %v336 = vshrl.u32 %v335, 7
    %v337 = vsub.s32 4, %v336
    %v338 = vrot.slane %v239, %v337
    %v339 = vlaneseq
    %v340 = vshrl.u32 %v339, 7
    %v341 = vsub.s32 5, %v340
    %v342 = vrot.slane %v239, %v341
    %v343 = vlaneseq
    %v344 = vshrl.u32 %v343, 7
    %v345 = vsub.s32 6, %v344
    %v346 = vrot.slane %v239, %v345
    %v362 = vsel %vm269, %v290, 0.0
    %v363 = vsel %vm270, %v294, 0.0
    %v364 = vsel %vm271, %v298, 0.0
    %v365 = vsel %vm272, %v302, 0.0
    %v366 = vsel %vm273, %v306, 0.0
    %v367 = vsel %vm274, %v310, 0.0
    %v368 = vsel %vm275, %v314, 0.0
    %v369 = vsel %vm276, %v318, 0.0
    %v370 = vsel %vm277, %v322, 0.0
    %v371 = vsel %vm278, %v326, 0.0
    %v372 = vsel %vm279, %v330, 0.0
    %v373 = vsel %vm280, %v334, 0.0
    %v374 = vsel %vm281, %v338, 0.0
    %v375 = vsel %vm282, %v342, 0.0
    %v376 = vsel %vm283, %v346, 0.0
    %v377 = vsel %vm201, %v362, 0.0
    %v378 = vsel %vm201, %v363, 0.0
    %v379 = vadd.f32 %v377, %v378
    %v380 = vsel %vm201, %v364, 0.0
    %v381 = vadd.f32 %v379, %v380
    %v382 = vsel %vm201, %v365, 0.0
    %v383 = vadd.f32 %v381, %v382
    %v384 = vsel %vm201, %v366, 0.0
    %v385 = vadd.f32 %v383, %v384
    %v386 = vsel %vm201, %v367, 0.0
    %v387 = vadd.f32 %v385, %v386
    %v388 = vsel %vm201, %v368, 0.0
    %v389 = vadd.f32 %v387, %v388
    %v390 = vsel %vm201, %v369, 0.0
    %v391 = vadd.f32 %v389, %v390
    %v392 = vsel %vm201, %v370, 0.0
    %v393 = vadd.f32 %v391, %v392
    %v394 = vsel %vm201, %v371, 0.0
    %v395 = vadd.f32 %v393, %v394
    %v396 = vsel %vm201, %v372, 0.0
    %v397 = vadd.f32 %v395, %v396
    %v398 = vsel %vm201, %v373, 0.0
    %v399 = vadd.f32 %v397, %v398
    %v400 = vsel %vm201, %v374, 0.0
    %v401 = vadd.f32 %v399, %v400
    %v402 = vsel %vm201, %v375, 0.0
    %v403 = vadd.f32 %v401, %v402
    %vm404 = vcmask 57344
    %v405 = vsel %vm404, %v376, 0.0
    %v406 = vadd.f32 %v403, %v405
    %407 = vadd.xlane.f32.xlu0 %v406
    %v408 = vpop.xlane.xlu0 %407
    %v409 = vrot.slane %v408, 4
    %v410 = vadd.f32 %v408, %v409
    %v411 = vrot.slane %v410, 2
    %v412 = vadd.f32 %v410, %v411
    %v413 = vrot.slane %v412, 1
    %v414 = vadd.f32 %v412, %v413
    %s415 = vtos %v414
    %s416 = sadd.f32 %s284, %s415
    %s417 = scalar_lea.smem [#allocation2], 1
    %418 = sst [smem:[%s417]] %s416
    // Predicated region
    $region50: #{tpu_custom_call.1} parent=1 // pred_check
      %p419 = pneg %p90
    $region51: #{tpu_custom_call.1} parent=1 // pred_check_branch
      %421 = sbr.rel (%p419) target = $region53
    $region52: #{tpu_custom_call.1} parent=1 // pred_region
      %s422 = sld [smem:[#allocation2]]
      %v423 = vstv %s422
      %424 = vst [vmem:[#allocation14] sm:$0xff] %v423
      %s425 = sld [smem:[#allocation2 + $0x1]]
      %v426 = vstv %s425
      %427 = vst [vmem:[#allocation15] sm:$0xff] %v426
    $region53: #{tpu_custom_call.1} parent=1 // pred_fallthru
      _
    // Predicated region
    $region54: #{tpu_custom_call.1} parent=1 // pred_check
      _
    $region55: #{tpu_custom_call.1} parent=1 // pred_check_branch
      %429 = sbr.rel (0) target = $region57
    $region56: #{tpu_custom_call.1} parent=1 // pred_region
      %s431 = ssub.s32 128, 128
      %432 = vsyncadd [#allocation7], %s431
      %s434 = sshll.u32 [#allocation14], 4
      %s435 = int_to_ptr.vmem [resolvable:$true] %s434
      %437 = dma.vmem_to_hbm [thread:$0]  %s435, 128, %s7, [#allocation7]
    $region57: #{tpu_custom_call.1} parent=1 // pred_fallthru
      _
    // Predicated region
    $region58: #{tpu_custom_call.1} parent=1 // pred_check
      _
    $region59: #{tpu_custom_call.1} parent=1 // pred_check_branch
      %439 = sbr.rel (0) target = $region61
    $region60: #{tpu_custom_call.1} parent=1 // pred_region
      %s441 = ssub.s32 128, 128
      %442 = vsyncadd [#allocation16], %s441
      %s444 = sshll.u32 [#allocation15], 4
      %s445 = int_to_ptr.vmem [resolvable:$true] %s444
      %447 = dma.vmem_to_hbm [thread:$0]  %s445, 128, %s8, [#allocation16]
    $region61: #{tpu_custom_call.1} parent=1 // pred_fallthru
      _
    // Predicated region
    $region62: #{tpu_custom_call.1} parent=1 // pred_check
      _
    $region63: #{tpu_custom_call.1} parent=1 // pred_check_branch
      %449 = sbr.rel (0) target = $region65
    $region64: #{tpu_custom_call.1} parent=1 // pred_region
      %450 = dma.done [#allocation7], 128
    $region65: #{tpu_custom_call.1} parent=1 // pred_fallthru
      _
    // Predicated region
    $region66: #{tpu_custom_call.1} parent=1 // pred_check
      _
    $region67: #{tpu_custom_call.1} parent=1 // pred_check_branch
      %452 = sbr.rel (0) target = $region69
    $region68: #{tpu_custom_call.1} parent=1 // pred_region
      %453 = dma.done [#allocation16], 128
    $region69: #{tpu_custom_call.1} parent=1 // pred_fallthru
      _
    %454 = vsyncpa [#allocation6], 1
    %455 = vsyncpa [#allocation9], 1
    %456 = vsyncpa [#allocation12], 1
    %457 = vsyncpa [#allocation7], 1
    %458 = vsyncpa [#allocation16], 1

</llo_original>
